<compile_context>
chip_gen: v6e
topology: v6e:2x2x1
jax: 0.10.0
libtpu: 0.0.40
codegen_flags: <defaults>
</compile_context>

<pallas_src>
import functools

import jax
import jax.numpy as jnp
from jax.experimental import pallas as pl
from jax.experimental.pallas import tpu as pltpu


def _pick_tile(n, unit_bytes, target_bytes=2 * 1024 * 1024):
    """Largest tile t dividing n with t*unit_bytes <= target_bytes.

    t is either a multiple of 8 (sublane alignment for the (8,128) block rule)
    or n itself (full dim), so the resulting BlockSpecs are always legal.
    """
    budget = max(1, target_bytes // max(unit_bytes, 1))
    if budget >= n:
        return n
    t = (min(budget, n) // 8) * 8
    while t >= 8:
        if n % t == 0:
            return t
        t -= 8
    return n


# ---------------------------------------------------------------------------
# Pass 1: gate kernel (tiny compute, tiled over batch).  Per batch tile:
#   pooled = mean_{hw}(x)            one lane reduce + one mul by 1/(H*W)
#   h      = relu(pooled @ W1^T)     weights pre-transposed in the wrapper
#   gate   = sigmoid(h @ W2[:C]^T)   only the multiplicative half of W2
# ---------------------------------------------------------------------------
def _se_gate_kernel(x_ref, w1t_ref, w2ct_ref, gate_ref, *, inv_hw):
    x = x_ref[...]                                      # (tb, C, HW) lane-dense
    pooled = jnp.sum(x, axis=-1) * inv_hw               # (tb, C): single reduce
    h = jnp.dot(pooled, w1t_ref[...],
                preferred_element_type=jnp.float32)     # (tb, SE)
    h = jnp.maximum(h, 0.0)
    g = jnp.dot(h, w2ct_ref[...],
                preferred_element_type=jnp.float32)     # (tb, C) — no wasted half
    gate_ref[...] = jax.nn.sigmoid(g)


# ---------------------------------------------------------------------------
# Pass 2: scale kernel (the HBM-bound pass).  Rows = B*C, lane axis = H*W, so
# stores are lane-dense (unmasked vst when H*W is a multiple of 128) and the
# grid over row tiles gives BlockSpec double-buffered DMA/compute overlap.
# ---------------------------------------------------------------------------
def _se_scale_kernel(x_ref, gate_ref, o_ref):
    o_ref[...] = x_ref[...] * gate_ref[...]             # (tr, HW) * (tr, 1)


def squeeze_and_excitation(x, w1, w2, *, tile_bytes=2 * 1024 * 1024):
    B, C, H, W = x.shape
    SE = w1.shape[0]
    assert w1.shape == (SE, C)
    assert w2.shape == (2 * C, SE)
    HW = H * W
    x = x.astype(jnp.float32)

    # Wrapper-side layout plumbing (free relative to the HBM-bound main pass):
    #  * drop the unused bias half of W2 (only the first C rows feed the gate),
    #  * pre-transpose both weights so kernels do plain jnp.dot (no in-kernel
    #    .T / XLU transpose / extra VMEM copies),
    #  * flatten spatial dims so the last (lane) axis is H*W.
    w1t = w1.astype(jnp.float32).T                      # (C, SE)
    w2ct = w2[:C].astype(jnp.float32).T                 # (SE, C)
    x3 = x.reshape(B, C, HW)

    # Tiles sized for ~2 MiB per input block so 2 inputs x 2 pipeline buffers
    # + output buffers stay well under the scoped VMEM limit on every
    # generation (v7x: 64 MiB physical / 32 MiB scoped).
    compiler_params = pltpu.CompilerParams(
        dimension_semantics=("parallel",),              # megacore split on v7x
        vmem_limit_bytes=32 * 1024 * 1024,
    )

    # ---- pass 1: per-channel gate (B, C), tiled over batch ----
    tb = _pick_tile(B, C * HW * 4, tile_bytes)
    gate = pl.pallas_call(
        functools.partial(_se_gate_kernel, inv_hw=1.0 / HW),
        out_shape=jax.ShapeDtypeStruct((B, C), jnp.float32),
        grid=(B // tb,),
        in_specs=[
            pl.BlockSpec((tb, C, HW), lambda i: (i, 0, 0)),
            pl.BlockSpec((C, SE), lambda i: (0, 0)),
            pl.BlockSpec((SE, C), lambda i: (0, 0)),
        ],
        out_specs=pl.BlockSpec((tb, C), lambda i: (i, 0)),
        compiler_params=compiler_params,
    )(x3, w1t, w2ct)

    # ---- pass 2: out = x * gate, tiled over B*C rows, lane-dense in H*W ----
    rows = B * C
    x2 = x3.reshape(rows, HW)
    g2 = gate.reshape(rows, 1)
    tr = _pick_tile(rows, HW * 4, tile_bytes)
    out2 = pl.pallas_call(
        _se_scale_kernel,
        out_shape=jax.ShapeDtypeStruct((rows, HW), jnp.float32),
        grid=(rows // tr,),
        in_specs=[
            pl.BlockSpec((tr, HW), lambda i: (i, 0)),
            pl.BlockSpec((tr, 1), lambda i: (i, 0)),
        ],
        out_specs=pl.BlockSpec((tr, HW), lambda i: (i, 0)),
        compiler_params=compiler_params,
    )(x2, g2)

    return out2.reshape(B, C, H, W)


def _reference(x, w1, w2):
    pooled = jnp.mean(x, axis=(2, 3))                   # (B, C)
    h = jnp.maximum(pooled @ w1.T, 0.0)                 # (B, SE)
    g = jax.nn.sigmoid(h @ w2.T)                        # (B, 2C)
    gate = g[:, : x.shape[1]]
    return x * gate[:, :, None, None]


if __name__ == "__main__":
    # Small shapes consistent with the module (ResBlock uses se_channels=32).
    B, C, SE, H, W = 2, 4, 32, 16, 16

    key = jax.random.PRNGKey(0)
    kx, k1, k2 = jax.random.split(key, 3)

    x = jax.random.normal(kx, (B, C, H, W), dtype=jnp.float32)
    # PyTorch Linear weight layout: (out_features, in_features).
    w1 = 0.1 * jax.random.normal(k1, (SE, C), dtype=jnp.float32)
    w2 = 0.1 * jax.random.normal(k2, (2 * C, SE), dtype=jnp.float32)

    out = squeeze_and_excitation(x, w1, w2)
    out = jax.block_until_ready(out)

    ref = _reference(x, w1, w2)
    assert out.shape == (B, C, H, W)
    assert jnp.allclose(out, ref, atol=1e-5, rtol=1e-5), "mismatch vs JAX reference"

    print("KERNEL_OK")
</pallas_src>

<mosaic_0001>
module attributes {stable_mosaic.version = 11 : i64} {
  func.func @_se_gate_kernel(%arg0: i32, %arg1: memref<2x4x256xf32, #tpu.memory_space<vmem>>, %arg2: memref<4x32xf32, #tpu.memory_space<vmem>>, %arg3: memref<32x4xf32, #tpu.memory_space<vmem>>, %arg4: memref<2x4xf32, #tpu.memory_space<vmem>>) attributes {dimension_semantics = [#tpu.dimension_semantics<parallel>], iteration_bounds = array<i64: 1>, scalar_prefetch = 0 : i64, scratch_operands = 0 : i64, tpu.core_type = #tpu.core_type<tc>, window_params = [{transform_indices = @transform_0, window_bounds = array<i64: 2, 4, 256>}, {pipeline_mode = #tpu.pipeline_mode<synchronous>, transform_indices = @transform_1, window_bounds = array<i64: 4, 32>}, {pipeline_mode = #tpu.pipeline_mode<synchronous>, transform_indices = @transform_2, window_bounds = array<i64: 32, 4>}, {transform_indices = @transform_3, window_bounds = array<i64: 2, 4>}]} {
    %c0 = arith.constant 0 : index
    %c0_0 = arith.constant 0 : index
    %c0_1 = arith.constant 0 : index
    %0 = vector.load %arg1[%c0, %c0_0, %c0_1] : memref<2x4x256xf32, #tpu.memory_space<vmem>>, vector<2x4x256xf32>
    %cst = arith.constant dense<0.000000e+00> : vector<2x4xf32>
    %1 = vector.multi_reduction <add>, %0, %cst [2] : vector<2x4x256xf32> to vector<2x4xf32>
    %cst_2 = arith.constant 3.906250e-03 : f32
    %2 = vector.broadcast %cst_2 : f32 to vector<2x4xf32>
    %3 = arith.mulf %1, %2 : vector<2x4xf32>
    %c0_3 = arith.constant 0 : index
    %c0_4 = arith.constant 0 : index
    %4 = vector.load %arg2[%c0_3, %c0_4] : memref<4x32xf32, #tpu.memory_space<vmem>>, vector<4x32xf32>
    %cst_5 = arith.constant dense<0.000000e+00> : vector<2x32xf32>
    %5 = tpu.matmul %3, %4, %cst_5 {dimension_numbers = #tpu.dot_dimension_numbers<[1], [0], [0], [1], [0, 0, 1, 1], [], []>} : vector<2x4xf32>, vector<4x32xf32>, vector<2x32xf32> -> vector<2x32xf32>
    %cst_6 = arith.constant 0.000000e+00 : f32
    %6 = vector.broadcast %cst_6 : f32 to vector<2x32xf32>
    %7 = arith.maximumf %5, %6 : vector<2x32xf32>
    %c0_7 = arith.constant 0 : index
    %c0_8 = arith.constant 0 : index
    %8 = vector.load %arg3[%c0_7, %c0_8] : memref<32x4xf32, #tpu.memory_space<vmem>>, vector<32x4xf32>
    %cst_9 = arith.constant dense<0.000000e+00> : vector<2x4xf32>
    %9 = tpu.matmul %7, %8, %cst_9 {dimension_numbers = #tpu.dot_dimension_numbers<[1], [0], [0], [1], [0, 0, 1, 1], [], []>} : vector<2x32xf32>, vector<32x4xf32>, vector<2x4xf32> -> vector<2x4xf32>
    %10 = arith.negf %9 : vector<2x4xf32>
    %11 = math.exp %10 : vector<2x4xf32>
    %cst_10 = arith.constant 1.000000e+00 : f32
    %12 = vector.broadcast %cst_10 : f32 to vector<2x4xf32>
    %13 = arith.addf %12, %11 : vector<2x4xf32>
    %14 = arith.divf %12, %13 : vector<2x4xf32>
    %c0_11 = arith.constant 0 : index
    %c0_12 = arith.constant 0 : index
    %15 = vector.load %arg4[%c0_11, %c0_12] : memref<2x4xf32, #tpu.memory_space<vmem>>, vector<2x4xf32>
    tpu.vector_store %arg4[%c0_11, %c0_12], %14 {strides = array<i32>} : memref<2x4xf32, #tpu.memory_space<vmem>>, vector<2x4xf32>,
    return
  }
  func.func @transform_0(%arg0: i32) -> (i32, i32, i32) {
    %c0_i32 = arith.constant 0 : i32
    %c0_i32_0 = arith.constant 0 : i32
    %c0_i32_1 = arith.constant 0 : i32
    return %arg0, %c0_i32, %c0_i32_0 : i32, i32, i32
  }
  func.func @transform_1(%arg0: i32) -> (i32, i32) {
    %c0_i32 = arith.constant 0 : i32
    %c0_i32_0 = arith.constant 0 : i32
    %c0_i32_1 = arith.constant 0 : i32
    return %c0_i32, %c0_i32_0 : i32, i32
  }
  func.func @transform_2(%arg0: i32) -> (i32, i32) {
    %c0_i32 = arith.constant 0 : i32
    %c0_i32_0 = arith.constant 0 : i32
    %c0_i32_1 = arith.constant 0 : i32
    return %c0_i32, %c0_i32_0 : i32, i32
  }
  func.func @transform_3(%arg0: i32) -> (i32, i32) {
    %c0_i32 = arith.constant 0 : i32
    %c0_i32_0 = arith.constant 0 : i32
    return %arg0, %c0_i32 : i32, i32
  }
}

</mosaic_0001>

<llo_original>
// kernel: tpu_custom_call.1
$region0: #{tpu_custom_call.1}
  #allocation0 [shape = 'u32[]', space=smem, size = 0x4, offset = 0x4, fixed_abs, tag = 'smem constant byte address 0x4 - core index']
  #allocation1 [shape = 'u32[144,128]{1,0:T(1,128)}', space=vmem, size = 0x12000, scoped, tag = 'internal scratch']
  %s0 = inlined_call_operand.vmem [shape: f32[2,4,256], index: 0, kind: input, shape index: {}]
  %s1 = inlined_call_operand.vmem [shape: f32[4,32], index: 1, kind: input, shape index: {}]
  %s2 = inlined_call_operand.vmem [shape: f32[32,4], index: 2, kind: input, shape index: {}]
  %s3 = inlined_call_operand.hbm [shape: f32[2,4], index: 3, kind: output, shape index: {}]
  %s4 = sld [smem:[#allocation0]]
  $region22: #{tpu_custom_call.1} parent=0
    _
  %s6 = ssub.s32 1, %s4
  %s7 = scalar_select 0, %s6, %s4
  $region1: #{tpu_custom_call.1} parent=0
    #allocation2 [shape = 'u8[1024]{0}', space=vmem, size = 0x400, scoped, tag = 'output window, operand 0, single buffered']
    #allocation3 [shape = 's32[1]{0}', space=sflag, size = 0x4, scoped, tag = 'scoped memory for tpu_custom_call.1']
    %8 = vsyncpa [#allocation3], 0
    // Predicated region
    $region2: #{tpu_custom_call.1} parent=1 // pred_check
      _
    $region3: #{tpu_custom_call.1} parent=1 // pred_check_branch
      %10 = sbr.rel (0) target = $region5
    $region4: #{tpu_custom_call.1} parent=1 // pred_region
      _
    $region5: #{tpu_custom_call.1} parent=1 // pred_fallthru
      _
    // Predicated region
    $region6: #{tpu_custom_call.1} parent=1 // pred_check
      _
    $region7: #{tpu_custom_call.1} parent=1 // pred_check_branch
      %12 = sbr.rel (0) target = $region9
    $region8: #{tpu_custom_call.1} parent=1 // pred_region
      _
    $region9: #{tpu_custom_call.1} parent=1 // pred_fallthru
      _
    // Predicated region
    $region10: #{tpu_custom_call.1} parent=1 // pred_check
      _
    $region11: #{tpu_custom_call.1} parent=1 // pred_check_branch
      %14 = sbr.rel (0) target = $region13
    $region12: #{tpu_custom_call.1} parent=1 // pred_region
      _
    $region13: #{tpu_custom_call.1} parent=1 // pred_fallthru
      _
    %v15 = vld [vmem:[%s0] sm:$0xff]
    %v16 = vld [vmem:[%s0 + $0x8] sm:$0xff]
    %v19 = vcombine.high %v15, %v15
    %v20 = vcombine.high %v16, %v16
    %vm23 = vcmask 1043456
    %v24 = vsel %vm23, %v15, 0.0
    %v25 = vsel %vm23, %v19, 0.0
    %v26 = vadd.f32 %v24, %v25
    %27 = vadd.xlane.f32.xlu0 %v26
    %v28 = vpop.xlane.xlu0 %27
    %v29 = vsel %vm23, %v16, 0.0
    %v30 = vsel %vm23, %v20, 0.0
    %v31 = vadd.f32 %v29, %v30
    %32 = vadd.xlane.f32.xlu0 %v31
    %v33 = vpop.xlane.xlu0 %32
    %v34 = vmul.f32 %v28, 0.00390625
    %v35 = vmul.f32 %v33, 0.00390625
    %v36 = vld [vmem:[%s1] sm:$0xf]
    %v39 = vlaneseq
    %v40 = vand.u32 %v39, 127
    %v41 = vlaneseq
    %v42 = vshrl.u32 %v41, 7
    %v43 = vsub.s32 %v40, %v42
    %v44 = vrot.slane %v34, %v43
    %v45 = vlaneseq
    %v46 = vshrl.u32 %v45, 7
    %v47 = vsub.s32 %v40, %v46
    %v48 = vrot.slane %v35, %v47
    %vm49 = vcmask 1041409
    %v50 = vsel %vm49, %v48, %v44
    %vm51 = vcmask 31744
    %v52 = vsel %vm51, %v50, 0
    %v55 = vsel %vm23, %v36, 0
    %57 = vmatprep.subr.mxu0 0.0
    %58 = vmatpush1.msra.mxu0 0.0
    %59 = vmatprep.subr.mxu0 0.0
    %60 = vmatpush1.msra.mxu0 0.0
    %61 = vmatprep.subr.mxu0 0.0
    %62 = vmatpush1.msra.mxu0 0.0
    %63 = vmatprep.subr.mxu0 0.0
    %64 = vmatpush1.msra.mxu0 0.0
    %65 = vmatprep.subr.mxu0 0.0
    %66 = vmatpush1.msra.mxu0 0.0
    %67 = vmatprep.subr.mxu0 0.0
    %68 = vmatpush1.msra.mxu0 0.0
    %69 = vmatprep.subr.mxu0 0.0
    %70 = vmatpush1.msra.mxu0 0.0
    %71 = vmatprep.subr.mxu0 0.0
    %72 = vmatpush1.msra.mxu0 0.0
    %73 = vmatprep.subr.mxu0 0.0
    %74 = vmatpush1.msra.mxu0 0.0
    %75 = vmatprep.subr.mxu0 0.0
    %76 = vmatpush1.msra.mxu0 0.0
    %77 = vmatprep.subr.mxu0 0.0
    %78 = vmatpush1.msra.mxu0 0.0
    %79 = vmatprep.subr.mxu0 0.0
    %80 = vmatpush1.msra.mxu0 0.0
    %81 = vmatprep.subr.mxu0 0.0
    %82 = vmatpush1.msra.mxu0 0.0
    %83 = vmatprep.subr.mxu0 0.0
    %84 = vmatpush1.msra.mxu0 0.0
    %85 = vmatprep.subr.mxu0 0.0
    %86 = vmatpush1.msra.mxu0 0.0
    %87 = vmatprep.subr.mxu0 0.0
    %88 = vmatpush1.msra.mxu0 %v55
    %89 = vmatprep.subr.mxu0 0.0
    %90 = vmatpush2.msra.mxu0 0.0
    %91 = vmatprep.subr.mxu0 0.0
    %92 = vmatpush2.msra.mxu0 0.0
    %93 = vmatprep.subr.mxu0 0.0
    %94 = vmatpush2.msra.mxu0 0.0
    %95 = vmatprep.subr.mxu0 0.0
    %96 = vmatpush2.msra.mxu0 0.0
    %97 = vmatprep.subr.mxu0 0.0
    %98 = vmatpush2.msra.mxu0 0.0
    %99 = vmatprep.subr.mxu0 0.0
    %100 = vmatpush2.msra.mxu0 0.0
    %101 = vmatprep.subr.mxu0 0.0
    %102 = vmatpush2.msra.mxu0 0.0
    %103 = vmatprep.subr.mxu0 0.0
    %104 = vmatpush2.msra.mxu0 0.0
    %105 = vmatprep.subr.mxu0 0.0
    %106 = vmatpush2.msra.mxu0 0.0
    %107 = vmatprep.subr.mxu0 0.0
    %108 = vmatpush2.msra.mxu0 0.0
    %109 = vmatprep.subr.mxu0 0.0
    %110 = vmatpush2.msra.mxu0 0.0
    %111 = vmatprep.subr.mxu0 0.0
    %112 = vmatpush2.msra.mxu0 0.0
    %113 = vmatprep.subr.mxu0 0.0
    %114 = vmatpush2.msra.mxu0 0.0
    %115 = vmatprep.subr.mxu0 0.0
    %116 = vmatpush2.msra.mxu0 0.0
    %117 = vmatprep.subr.mxu0 0.0
    %118 = vmatpush2.msra.mxu0 0.0
    %119 = vmatprep.subr.mxu0 0.0
    %120 = vmatpush2.msra.mxu0 0.0
    %121 = vmatprep.mubr.f32.mxu0 0.0
    %122 = vmatmul.mubr.f32.gmra.mxu0 %v52
    %v123 = vpop.f32.mrf.mxu0
    %v124 = vadd.f32 0.0, %v123
    %v125 = vpop.f32.mrf.mxu0
    %126 = vdwg.mxu0
    %v127 = vmax.f32 %v124, 0.0
    %v128 = vld [vmem:[%s2] sm:$0xff]
    %v129 = vld [vmem:[%s2 + $0x8] sm:$0xff]
    %v130 = vld [vmem:[%s2 + $0x10] sm:$0xff]
    %v131 = vld [vmem:[%s2 + $0x18] sm:$0xff]
    %vm132 = vcmask 261120
    %v134 = vsel %vm132, %v127, 0
    %136 = vmatprep.subr.mxu0 0.0
    %137 = vmatpush1.msra.mxu0 0.0
    %138 = vmatprep.subr.mxu0 0.0
    %139 = vmatpush1.msra.mxu0 0.0
    %140 = vmatprep.subr.mxu0 0.0
    %141 = vmatpush1.msra.mxu0 0.0
    %142 = vmatprep.subr.mxu0 0.0
    %143 = vmatpush1.msra.mxu0 0.0
    %144 = vmatprep.subr.mxu0 0.0
    %145 = vmatpush1.msra.mxu0 0.0
    %146 = vmatprep.subr.mxu0 0.0
    %147 = vmatpush1.msra.mxu0 0.0
    %148 = vmatprep.subr.mxu0 0.0
    %149 = vmatpush1.msra.mxu0 0.0
    %150 = vmatprep.subr.mxu0 0.0
    %151 = vmatpush1.msra.mxu0 0.0
    %152 = vmatprep.subr.mxu0 0.0
    %153 = vmatpush1.msra.mxu0 0.0
    %154 = vmatprep.subr.mxu0 0.0
    %155 = vmatpush1.msra.mxu0 0.0
    %156 = vmatprep.subr.mxu0 0.0
    %157 = vmatpush1.msra.mxu0 0.0
    %158 = vmatprep.subr.mxu0 0.0
    %159 = vmatpush1.msra.mxu0 0.0
    %160 = vmatprep.subr.mxu0 0.0
    %161 = vmatpush1.msra.mxu0 %v131
    %162 = vmatprep.subr.mxu0 0.0
    %163 = vmatpush1.msra.mxu0 %v130
    %164 = vmatprep.subr.mxu0 0.0
    %165 = vmatpush1.msra.mxu0 %v129
    %166 = vmatprep.subr.mxu0 0.0
    %167 = vmatpush1.msra.mxu0 %v128
    %168 = vmatprep.subr.mxu0 0.0
    %169 = vmatpush2.msra.mxu0 0.0
    %170 = vmatprep.subr.mxu0 0.0
    %171 = vmatpush2.msra.mxu0 0.0
    %172 = vmatprep.subr.mxu0 0.0
    %173 = vmatpush2.msra.mxu0 0.0
    %174 = vmatprep.subr.mxu0 0.0
    %175 = vmatpush2.msra.mxu0 0.0
    %176 = vmatprep.subr.mxu0 0.0
    %177 = vmatpush2.msra.mxu0 0.0
    %178 = vmatprep.subr.mxu0 0.0
    %179 = vmatpush2.msra.mxu0 0.0
    %180 = vmatprep.subr.mxu0 0.0
    %181 = vmatpush2.msra.mxu0 0.0
    %182 = vmatprep.subr.mxu0 0.0
    %183 = vmatpush2.msra.mxu0 0.0
    %184 = vmatprep.subr.mxu0 0.0
    %185 = vmatpush2.msra.mxu0 0.0
    %186 = vmatprep.subr.mxu0 0.0
    %187 = vmatpush2.msra.mxu0 0.0
    %188 = vmatprep.subr.mxu0 0.0
    %189 = vmatpush2.msra.mxu0 0.0
    %190 = vmatprep.subr.mxu0 0.0
    %191 = vmatpush2.msra.mxu0 0.0
    %192 = vmatprep.subr.mxu0 0.0
    %193 = vmatpush2.msra.mxu0 0.0
    %194 = vmatprep.subr.mxu0 0.0
    %195 = vmatpush2.msra.mxu0 0.0
    %196 = vmatprep.subr.mxu0 0.0
    %197 = vmatpush2.msra.mxu0 0.0
    %198 = vmatprep.subr.mxu0 0.0
    %199 = vmatpush2.msra.mxu0 0.0
    %200 = vmatprep.mubr.f32.mxu0 0.0
    %201 = vmatmul.mubr.f32.gmra.mxu0 %v134
    %v202 = vpop.f32.mrf.mxu0
    %v203 = vadd.f32 0.0, %v202
    %v204 = vpop.f32.mrf.mxu0
    %205 = vdwg.mxu0
    %v206 = vxor.u32 %v203, 2147483648
    %v207 = vmul.f32 %v206, 1.442695
    %v208 = vpow.pop %v207
    %v209 = vadd.f32 %v208, 1.0
    %v210 = vrcp.pop %v209
    %v211 = vmul.f32 1.0, %v210
    %vm212 = vcmask 25600
    %213 = vst.msk [vmem:[#allocation2] sm:$0x3] %vm212, %v211
    // Predicated region
    $region14: #{tpu_custom_call.1} parent=1 // pred_check
      _
    $region15: #{tpu_custom_call.1} parent=1 // pred_check_branch
      %215 = sbr.rel (0) target = $region17
    $region16: #{tpu_custom_call.1} parent=1 // pred_region
      %s217 = ssub.s32 32, 32
      %218 = vsyncadd [#allocation3], %s217
      %s220 = sshll.u32 [#allocation2], 4
      %s221 = int_to_ptr.vmem [resolvable:$true] %s220
      %223 = dma.vmem_to_hbm [thread:$0]  %s221, 32, %s3, [#allocation3]
    $region17: #{tpu_custom_call.1} parent=1 // pred_fallthru
      _
    // Predicated region
    $region18: #{tpu_custom_call.1} parent=1 // pred_check
      _
    $region19: #{tpu_custom_call.1} parent=1 // pred_check_branch
      %225 = sbr.rel (0) target = $region21
    $region20: #{tpu_custom_call.1} parent=1 // pred_region
      %226 = dma.done [#allocation3], 32
    $region21: #{tpu_custom_call.1} parent=1 // pred_fallthru
      _
    %227 = vsyncpa [#allocation3], 1

</llo_original>
